<compile_context>
chip_gen: v7x
topology: tpu7x:2x2x1
jax: 0.10.0
libtpu: 0.0.40
codegen_flags: <defaults>
</compile_context>

<pallas_src>
import jax
import jax.numpy as jnp
from jax.experimental import pallas as pl
from jax.experimental.pallas import tpu as pltpu

_LANE = 128                          # vreg lane width
_SINGLE_BLOCK_BYTES = 512 * 1024     # <= this: one full-VMEM block, no grid
_TARGET_BLOCK_BYTES = 2 * 1024 * 1024   # ~2 MiB/block (safe on v5e scoped VMEM)
_MIN_BLOCK_BYTES = 256 * 1024        # below this, 0.35 us/step overhead dominates
_MIN_GRID_STEPS = 8                  # keep both v7x TensorCores fed


def lecun_kernel(x_ref, o_ref):
    # 1.7159 * tanh(0.666 * x): tanh -> EUP, multiplies -> VPU; memory bound.
    o_ref[...] = 1.7159 * jnp.tanh(0.666 * x_ref[...])


def _choose_tile_rows(rows, cols_padded, itemsize):
    """Pick a block row count: ~2 MiB blocks, >= ~256 KiB, >= ~8 grid steps."""
    row_bytes = cols_padded * itemsize
    tile = max(8, (_TARGET_BLOCK_BYTES // row_bytes) // 8 * 8)
    floor = max(8, (_MIN_BLOCK_BYTES // row_bytes) // 8 * 8)
    while tile > floor and pl.cdiv(rows, tile) < _MIN_GRID_STEPS:
        tile = max(floor, (tile // 2) // 8 * 8)
    tile = min(tile, pl.cdiv(rows, 8) * 8)
    return max(tile, 8)


def _run_2d(x2):
    """Run the kernel over a 2-D array (rows, cols); cols is the full block width."""
    rows, cols = x2.shape
    itemsize = jnp.dtype(x2.dtype).itemsize
    cols_padded = pl.cdiv(cols, _LANE) * _LANE          # VMEM footprint per row
    total_vmem_bytes = rows * cols_padded * itemsize
    n = rows * cols
    cost = pl.CostEstimate(flops=2 * n, transcendentals=n,
                           bytes_accessed=2 * n * itemsize)

    if total_vmem_bytes <= _SINGLE_BLOCK_BYTES:
        # Small input: single full-array VMEM block, no grid machinery.
        return pl.pallas_call(
            lecun_kernel,
            out_shape=jax.ShapeDtypeStruct((rows, cols), x2.dtype),
            in_specs=[pl.BlockSpec(memory_space=pltpu.MemorySpace.VMEM)],
            out_specs=pl.BlockSpec(memory_space=pltpu.MemorySpace.VMEM),
            cost_estimate=cost,
        )(x2)

    tile_rows = _choose_tile_rows(rows, cols_padded, itemsize)
    grid = (pl.cdiv(rows, tile_rows),)
    return pl.pallas_call(
        lecun_kernel,
        out_shape=jax.ShapeDtypeStruct((rows, cols), x2.dtype),
        grid=grid,
        in_specs=[pl.BlockSpec((tile_rows, cols), lambda i: (i, 0))],
        out_specs=pl.BlockSpec((tile_rows, cols), lambda i: (i, 0)),
        compiler_params=pltpu.CompilerParams(
            dimension_semantics=("parallel",)),
        cost_estimate=cost,
    )(x2)


def lecun_forward(x):
    """Apply 1.7159 * tanh(0.666 * x) elementwise via a Pallas TPU kernel."""
    orig_shape = x.shape
    n = x.size
    if n == 0:
        return x
    if n % _LANE == 0:
        # Lane-dense slab; reshape is free for contiguous arrays -> zero extra
        # HBM passes, every store is an unmasked full-lane vst.
        out2 = _run_2d(x.reshape(n // _LANE, _LANE))
        return out2.reshape(orig_shape)
    if x.ndim >= 2:
        # Ragged total size: collapse leading dims, keep the full trailing dim
        # as the block width (full-dim exemption); one masked lane column
        # instead of pad + slice HBM passes.
        last = orig_shape[-1]
        out2 = _run_2d(x.reshape(n // last, last))
        return out2.reshape(orig_shape)
    # 1-D ragged corner case: kernel on the 128-aligned bulk, tiny tail in JAX.
    bulk = (n // _LANE) * _LANE
    if bulk == 0:
        return (1.7159 * jnp.tanh(0.666 * x)).astype(x.dtype)
    head = _run_2d(x[:bulk].reshape(-1, _LANE)).reshape(-1)
    tail = (1.7159 * jnp.tanh(0.666 * x[bulk:])).astype(head.dtype)
    return jnp.concatenate([head, tail])


def _reference(x):
    # Matches the PyTorch spec exactly (constant is 0.666, not 2/3).
    return 1.7159 * jnp.tanh(0.666 * x)


if __name__ == "__main__":
    key = jax.random.PRNGKey(0)
    k1, k2, k3 = jax.random.split(key, 3)

    # 1) Small input, 128-aligned total size -> single full-VMEM-block path.
    x_small = jax.random.normal(k1, (2, 4, 16, 16), dtype=jnp.float32)
    out_small = jax.block_until_ready(lecun_forward(x_small))
    assert out_small.shape == x_small.shape and out_small.dtype == x_small.dtype
    assert jnp.allclose(out_small, _reference(x_small), atol=1e-5, rtol=1e-5)

    # 2) Mid-size, 128-aligned -> lane-dense tiled grid path (no pad/slice).
    x_mid = jax.random.normal(k2, (1024, 512), dtype=jnp.float32)
    out_mid = jax.block_until_ready(lecun_forward(x_mid))
    assert out_mid.shape == x_mid.shape
    assert jnp.allclose(out_mid, _reference(x_mid), atol=1e-5, rtol=1e-5)

    # 3) Ragged trailing dim -> full-trailing-dim block path (masked boundary
    #    blocks instead of extra HBM passes).
    x_rag = jax.random.normal(k3, (1300, 257), dtype=jnp.float32)
    out_rag = jax.block_until_ready(lecun_forward(x_rag))
    assert out_rag.shape == x_rag.shape
    assert jnp.allclose(out_rag, _reference(x_rag), atol=1e-5, rtol=1e-5)

    print("KERNEL_OK")
</pallas_src>

<mosaic_0001>
module attributes {stable_mosaic.version = 11 : i64} {
  func.func @lecun_kernel(%arg0: memref<16x128xf32, #tpu.memory_space<vmem>>, %arg1: memref<16x128xf32, #tpu.memory_space<vmem>>) attributes {dimension_semantics = [], scalar_prefetch = 0 : i64, scratch_operands = 0 : i64, tpu.core_type = #tpu.core_type<tc>} {
    %c0 = arith.constant 0 : index
    %c0_0 = arith.constant 0 : index
    %0 = vector.load %arg0[%c0, %c0_0] : memref<16x128xf32, #tpu.memory_space<vmem>>, vector<16x128xf32>
    %cst = arith.constant 6.660000e-01 : f32
    %1 = vector.broadcast %cst : f32 to vector<16x128xf32>
    %2 = arith.mulf %1, %0 : vector<16x128xf32>
    %3 = math.tanh %2 : vector<16x128xf32>
    %cst_1 = arith.constant 1.715900e+00 : f32
    %4 = vector.broadcast %cst_1 : f32 to vector<16x128xf32>
    %5 = arith.mulf %4, %3 : vector<16x128xf32>
    %c0_2 = arith.constant 0 : index
    %c0_3 = arith.constant 0 : index
    %6 = vector.load %arg1[%c0_2, %c0_3] : memref<16x128xf32, #tpu.memory_space<vmem>>, vector<16x128xf32>
    tpu.vector_store %arg1[%c0_2, %c0_3], %5 {strides = array<i32>} : memref<16x128xf32, #tpu.memory_space<vmem>>, vector<16x128xf32>,
    return
  }
}

</mosaic_0001>

<llo_original>
// kernel: tpu_custom_call.1
$region0: #{tpu_custom_call.1}
  #allocation0 [shape = 'u32[]', space=smem, size = 0x4, offset = 0x4, fixed_abs, tag = 'smem constant byte address 0x4 - core index']
  #allocation1 [shape = 'u32[144,128]{1,0:T(1,128)}', space=vmem, size = 0x12000, scoped, tag = 'internal scratch']
  %s0 = inlined_call_operand.hbm [shape: f32[16,128], index: 0, kind: input, shape index: {}]
  %s1 = inlined_call_operand.hbm [shape: f32[16,128], index: 1, kind: output, shape index: {}]
  %s2 = sld [smem:[#allocation0]]
  $region18: #{tpu_custom_call.1} parent=0
    _
  %s4 = ssub.s32 1, %s2
  %s5 = scalar_select 0, %s4, %s2
  $region1: #{tpu_custom_call.1} parent=0
    #allocation2 [shape = 'u8[8192]{0}', space=vmem, size = 0x2000, scoped, tag = 'input window, operand 0, single buffered']
    #allocation3 [shape = 's32[1]{0}', space=sflag, size = 0x4, scoped, tag = 'scoped memory for tpu_custom_call.1']
    #allocation4 [shape = 's32[1]{0}', space=sflag, size = 0x4, scoped, tag = 'scoped memory for tpu_custom_call.1']
    #allocation5 [shape = 'u8[8192]{0}', space=vmem, size = 0x2000, scoped, tag = 'output window, operand 0, single buffered']
    %6 = vsyncpa [#allocation3], 0
    %7 = vsyncpa [#allocation4], 0
    // Predicated region
    $region2: #{tpu_custom_call.1} parent=1 // pred_check
      _
    $region3: #{tpu_custom_call.1} parent=1 // pred_check_branch
      %9 = sbr.rel (0) target = $region5
    $region4: #{tpu_custom_call.1} parent=1 // pred_region
      %s11 = ssub.s32 256, 256
      %12 = vsyncadd [#allocation3], %s11
      %s13 = sshll.u32 [#allocation2], 4
      %s14 = int_to_ptr.vmem [resolvable:$true] %s13
      %19 = dma.hbm_to_vmem [thread:$0]  %s0, 256, %s14, [#allocation3], 128, 128, 8
    $region5: #{tpu_custom_call.1} parent=1 // pred_fallthru
      _
    // Predicated region
    $region6: #{tpu_custom_call.1} parent=1 // pred_check
      _
    $region7: #{tpu_custom_call.1} parent=1 // pred_check_branch
      %21 = sbr.rel (0) target = $region9
    $region8: #{tpu_custom_call.1} parent=1 // pred_region
      %22 = dma.done [#allocation3], 256
    $region9: #{tpu_custom_call.1} parent=1 // pred_fallthru
      _
    %v23 = vld [vmem:[#allocation2] sm:$0xff]
    %v24 = vld [vmem:[#allocation2 + $0x8] sm:$0xff]
    %v25 = vmul.f32 %v23, 0.666
    %v26 = vmul.f32 %v24, 0.666
    %v27 = vtanh.pop %v25
    %v28 = vtanh.pop %v26
    %v29 = vmul.f32 %v27, 1.7159
    %v30 = vmul.f32 %v28, 1.7159
    %31 = vst [vmem:[#allocation5] sm:$0xff] %v29
    %32 = vst [vmem:[#allocation5 + $0x8] sm:$0xff] %v30
    // Predicated region
    $region10: #{tpu_custom_call.1} parent=1 // pred_check
      _
    $region11: #{tpu_custom_call.1} parent=1 // pred_check_branch
      %34 = sbr.rel (0) target = $region13
    $region12: #{tpu_custom_call.1} parent=1 // pred_region
      %s36 = ssub.s32 256, 256
      %37 = vsyncadd [#allocation4], %s36
      %s38 = sshll.u32 [#allocation5], 4
      %s39 = int_to_ptr.vmem [resolvable:$true] %s38
      %44 = dma.vmem_to_hbm [thread:$0]  %s39, 256, %s1, [#allocation4], 128, 128, 8
    $region13: #{tpu_custom_call.1} parent=1 // pred_fallthru
      _
    // Predicated region
    $region14: #{tpu_custom_call.1} parent=1 // pred_check
      _
    $region15: #{tpu_custom_call.1} parent=1 // pred_check_branch
      %46 = sbr.rel (0) target = $region17
    $region16: #{tpu_custom_call.1} parent=1 // pred_region
      %47 = dma.done [#allocation4], 256
    $region17: #{tpu_custom_call.1} parent=1 // pred_fallthru
      _
    %48 = vsyncpa [#allocation3], 1
    %49 = vsyncpa [#allocation4], 1

</llo_original>
